<compile_context>
chip_gen: v7x
topology: tpu7x:2x2x1
jax: 0.10.0
libtpu: 0.0.40
codegen_flags: <defaults>
</compile_context>

<pallas_src>
import functools
import math

import jax
import jax.numpy as jnp
from jax.experimental import pallas as pl
from jax.experimental.pallas import tpu as pltpu

EPSILON = 1e-09
DOC_WEIGHTS_INIT = 0.1


def _round_up(x, m):
    return ((x + m - 1) // m) * m


def _lda2vec_loss_kernel(doc_w_ref, topic_ref, pivot_ref, comb_ref, sign_ref,
                         w_ref, neg_out_ref, dir_out_ref, *, dir_scale,
                         log_eps):
    i = pl.program_id(0)

    @pl.when(i == 0)
    def _init():
        neg_out_ref[...] = jnp.zeros_like(neg_out_ref)
        dir_out_ref[...] = jnp.zeros_like(dir_out_ref)

    doc_w = doc_w_ref[...]                       # [TB, T] f32
    topic = topic_ref[...]                       # [T, D]  f32 (resident)
    pivot = pivot_ref[...]                       # [TB, D] f32
    sign = sign_ref[...]                         # [1, WT] f32 (+1 tgt / -1 noise)
    w = w_ref[...]                               # [TB, 1] f32 (pre-normalized)

    # --- softmax over topics + topic mixture (tiny K=T matmul; pure filler in
    #     a mem-bound kernel) --------------------------------------------------
    m = jnp.max(doc_w, axis=1, keepdims=True)    # [TB, 1]
    e = jnp.exp(doc_w - m)                       # [TB, T]
    s = jnp.sum(e, axis=1, keepdims=True)        # [TB, 1]
    doc_vectors = jnp.dot(e / s, topic,
                          preferred_element_type=jnp.float32)   # [TB, D]
    context = doc_vectors + pivot                # [TB, D]

    # --- fused positive/negative score path -----------------------------------
    # one broadcast of context, one multiply-reduce, one log-sigmoid pass.
    comb = comb_ref[...].astype(jnp.float32)     # [TB, WT, D] (bf16 in HBM)
    scores = jnp.sum(comb * context[:, None, :], axis=2) * sign   # [TB, WT]
    # log(clamp(sigmoid(x), min=EPS)) == max(log_sigmoid(x), log(EPS))
    log_sig = jnp.minimum(scores, 0.0) - jnp.log(1.0 + jnp.exp(-jnp.abs(scores)))
    log_sig = jnp.maximum(log_sig, log_eps)
    neg_per = jnp.sum(log_sig, axis=1, keepdims=True)             # [TB, 1]

    # --- dirichlet prior: per-example sum of log-softmax over topics ----------
    dir_per = jnp.sum((doc_w - m) - jnp.log(s), axis=1, keepdims=True)  # [TB,1]

    # --- weighted partial sums (w already holds raw/sum(raw); the batch mean
    #     is folded into it, padded rows carry w == 0) -------------------------
    neg_out_ref[...] += -jnp.sum(w * neg_per, axis=0, keepdims=True)
    dir_out_ref[...] += dir_scale * jnp.sum(w * dir_per, axis=0, keepdims=True)


def lda2vec_loss(doc_weights, topic_vectors, pivot_vectors, targets, noise,
                 w_raw, *, lambda_const, alpha, block_batch=128,
                 compute_dtype=jnp.bfloat16):
    """Forward of lda2vec `loss` (eval-mode dropout). Returns (neg, dirichlet)."""
    batch, n_topics = doc_weights.shape
    emb_dim = topic_vectors.shape[1]
    n_window = targets.shape[1]
    n_noise = noise.shape[1]
    wt = n_window + n_noise

    # Fuse positive and negative words into one lane-dense stream (bf16 halves
    # the HBM traffic of the dominant arrays; accumulation stays f32 in-kernel).
    combined = jnp.concatenate([targets, noise], axis=1).astype(compute_dtype)
    sign = jnp.concatenate([jnp.ones((1, n_window), jnp.float32),
                            -jnp.ones((1, n_noise), jnp.float32)], axis=1)

    # Hoist the global weight normalization (and the batch mean) out of the
    # kernel:  -(1/B) * sum_i (raw_i*B/sum(raw)) * x_i  ==  -sum_i (raw_i/sum(raw)) * x_i
    w_eff = (w_raw.astype(jnp.float32) / jnp.sum(w_raw)).astype(jnp.float32)

    # Batch tiling (tile must be a multiple of 8 sublanes unless it equals B).
    tb = min(block_batch, _round_up(batch, 8))
    tb = _round_up(tb, 8)
    batch_p = _round_up(batch, tb)
    pad = batch_p - batch
    doc_w_f32 = doc_weights.astype(jnp.float32)
    pivot_f32 = pivot_vectors.astype(jnp.float32)
    topic_f32 = topic_vectors.astype(jnp.float32)
    if pad:
        doc_w_f32 = jnp.pad(doc_w_f32, ((0, pad), (0, 0)))
        pivot_f32 = jnp.pad(pivot_f32, ((0, pad), (0, 0)))
        combined = jnp.pad(combined, ((0, pad), (0, 0), (0, 0)))
        w_eff = jnp.pad(w_eff, ((0, pad), (0, 0)))   # zero weight => no effect

    grid = (batch_p // tb,)
    dir_scale = float(lambda_const) * (1.0 - float(alpha))

    nbytes = sum(int(x.size) * x.dtype.itemsize
                 for x in (doc_w_f32, topic_f32, pivot_f32, combined, sign,
                           w_eff)) + 8
    cost = pl.CostEstimate(
        flops=int(batch_p * (2 * wt * emb_dim + 2 * n_topics * emb_dim
                             + 8 * wt + 4 * n_topics)),
        transcendentals=int(batch_p * (n_topics + 2 * wt)),
        bytes_accessed=int(nbytes))

    kernel = functools.partial(_lda2vec_loss_kernel,
                               dir_scale=dir_scale,
                               log_eps=float(math.log(EPSILON)))

    neg, diri = pl.pallas_call(
        kernel,
        grid=grid,
        in_specs=[
            pl.BlockSpec((tb, n_topics), lambda i: (i, 0)),
            pl.BlockSpec((n_topics, emb_dim), lambda i: (0, 0)),
            pl.BlockSpec((tb, emb_dim), lambda i: (i, 0)),
            pl.BlockSpec((tb, wt, emb_dim), lambda i: (i, 0, 0)),
            pl.BlockSpec((1, wt), lambda i: (0, 0)),
            pl.BlockSpec((tb, 1), lambda i: (i, 0)),
        ],
        out_specs=(pl.BlockSpec((1, 1), lambda i: (0, 0)),
                   pl.BlockSpec((1, 1), lambda i: (0, 0))),
        out_shape=(jax.ShapeDtypeStruct((1, 1), jnp.float32),
                   jax.ShapeDtypeStruct((1, 1), jnp.float32)),
        compiler_params=pltpu.CompilerParams(
            dimension_semantics=("arbitrary",),      # reduction into scalars
            vmem_limit_bytes=32 * 1024 * 1024),      # safe on v5e/v6e/v7x
        cost_estimate=cost,
    )(doc_w_f32, topic_f32, pivot_f32, combined, sign, w_eff)
    return neg[0, 0], diri[0, 0]


def reference_loss(doc_weights, topic_vectors, pivot_vectors, targets, noise,
                   w_raw, *, lambda_const, alpha):
    """Pure-JAX reference mirroring the PyTorch forward (eval-mode dropout)."""
    b = doc_weights.shape[0]
    w = w_raw[:, 0]
    w = w / jnp.sum(w) * b
    doc_probs = jax.nn.softmax(doc_weights, axis=1)
    doc_vectors = doc_probs @ topic_vectors
    context = doc_vectors + pivot_vectors
    log_t = jnp.log(jnp.clip(jax.nn.sigmoid(
        jnp.sum(targets * context[:, None, :], axis=2)), EPSILON))
    log_n = jnp.log(jnp.clip(jax.nn.sigmoid(
        -jnp.sum(noise * context[:, None, :], axis=2)), EPSILON))
    neg_per = log_t.sum(1) + log_n.sum(1)
    neg_loss = -jnp.mean(w * neg_per)
    dir_loss = jnp.mean(w * jax.nn.log_softmax(doc_weights, axis=1).sum(1))
    dir_loss = dir_loss * lambda_const * (1.0 - alpha)
    return neg_loss, dir_loss


if __name__ == "__main__":
    # ---- small, deterministic configuration --------------------------------
    vocab_size = 64
    embedding_dim = 32
    n_topics = 8
    n_documents = 16
    batch_size = 20          # not a multiple of the batch tile -> exercises padding
    window_size = 4
    num_sampled = 5
    lambda_const = 100.0
    alpha = 1.0 / n_topics

    key = jax.random.PRNGKey(0)
    keys = jax.random.split(key, 10)

    # ---- parameters (deterministic synthetic init) --------------------------
    word_vectors = jax.random.normal(keys[0], (vocab_size, embedding_dim),
                                     jnp.float32) * 0.1
    unigram = jax.random.uniform(keys[1], (vocab_size,), jnp.float32) + 0.1
    unigram = unigram / jnp.sum(unigram)
    doc_weight_table = jax.random.normal(
        keys[2], (n_documents, n_topics), jnp.float32) * DOC_WEIGHTS_INIT
    topic_vectors = jax.random.normal(keys[3], (n_topics, embedding_dim),
                                      jnp.float32) * 0.1
    loss_doc_weights = jax.random.uniform(
        keys[4], (n_documents,), jnp.float32) + 0.5

    # ---- forward inputs ------------------------------------------------------
    doc_indices = jax.random.randint(keys[5], (batch_size,), 0, n_documents)
    pivot_words = jax.random.randint(keys[6], (batch_size,), 0, vocab_size)
    target_words = jax.random.randint(keys[7], (batch_size, window_size),
                                      0, vocab_size)

    # ---- plain-JAX glue: embedding gathers + negative word sampling ---------
    doc_weights = doc_weight_table[doc_indices]             # [B, T]
    w_raw = loss_doc_weights[doc_indices][:, None]          # [B, 1]
    pivot_vectors = word_vectors[pivot_words]               # [B, D]
    targets = word_vectors[target_words]                    # [B, W, D]
    # AliasMultinomial.draw equivalent: categorical sampling from the unigram
    # distribution (different RNG stream than PyTorch, same semantics).
    noise_idx = jax.random.choice(
        keys[8], vocab_size,
        shape=(batch_size, window_size * num_sampled),
        replace=True, p=unigram)                             # [B, W*S]
    noise = word_vectors[noise_idx]                          # [B, W*S, D]

    neg_loss, dir_loss = lda2vec_loss(
        doc_weights, topic_vectors, pivot_vectors, targets, noise, w_raw,
        lambda_const=lambda_const, alpha=alpha, block_batch=8)  # 3 grid steps
    jax.block_until_ready((neg_loss, dir_loss))

    # Tight check: reference fed the same bf16-rounded embeddings the kernel
    # consumes (validates kernel math independent of quantization error).
    targets_q = targets.astype(jnp.bfloat16).astype(jnp.float32)
    noise_q = noise.astype(jnp.bfloat16).astype(jnp.float32)
    ref_neg_q, ref_dir_q = reference_loss(
        doc_weights, topic_vectors, pivot_vectors, targets_q, noise_q, w_raw,
        lambda_const=lambda_const, alpha=alpha)
    assert jnp.allclose(neg_loss, ref_neg_q, rtol=1e-4, atol=1e-4), \
        (neg_loss, ref_neg_q)
    assert jnp.allclose(dir_loss, ref_dir_q, rtol=1e-4, atol=1e-3), \
        (dir_loss, ref_dir_q)

    # Loose parity check against the full-f32 PyTorch-equivalent reference.
    ref_neg, ref_dir = reference_loss(
        doc_weights, topic_vectors, pivot_vectors, targets, noise, w_raw,
        lambda_const=lambda_const, alpha=alpha)
    assert jnp.allclose(neg_loss, ref_neg, rtol=2e-2, atol=2e-2), \
        (neg_loss, ref_neg)
    assert jnp.allclose(dir_loss, ref_dir, rtol=2e-2, atol=2e-2), \
        (dir_loss, ref_dir)

    print("KERNEL_OK")
</pallas_src>

<mosaic_0001>
module attributes {stable_mosaic.version = 11 : i64} {
  func.func @_lda2vec_loss_kernel(%arg0: i32, %arg1: memref<8x8xf32, #tpu.memory_space<vmem>>, %arg2: memref<8x32xf32, #tpu.memory_space<vmem>>, %arg3: memref<8x32xf32, #tpu.memory_space<vmem>>, %arg4: memref<8x24x32xbf16, #tpu.memory_space<vmem>>, %arg5: memref<1x24xf32, #tpu.memory_space<vmem>>, %arg6: memref<8x1xf32, #tpu.memory_space<vmem>>, %arg7: memref<1x1xf32, #tpu.memory_space<vmem>>, %arg8: memref<1x1xf32, #tpu.memory_space<vmem>>) attributes {dimension_semantics = [#tpu.dimension_semantics<arbitrary>], iteration_bounds = array<i64: 3>, scalar_prefetch = 0 : i64, scratch_operands = 0 : i64, tpu.core_type = #tpu.core_type<tc>, window_params = [{transform_indices = @transform_0, window_bounds = array<i64: 8, 8>}, {pipeline_mode = #tpu.pipeline_mode<synchronous>, transform_indices = @transform_1, window_bounds = array<i64: 8, 32>}, {transform_indices = @transform_2, window_bounds = array<i64: 8, 32>}, {transform_indices = @transform_3, window_bounds = array<i64: 8, 24, 32>}, {pipeline_mode = #tpu.pipeline_mode<synchronous>, transform_indices = @transform_4, window_bounds = array<i64: 1, 24>}, {transform_indices = @transform_5, window_bounds = array<i64: 8, 1>}, {pipeline_mode = #tpu.pipeline_mode<synchronous>, transform_indices = @transform_6, window_bounds = array<i64: 1, 1>}, {pipeline_mode = #tpu.pipeline_mode<synchronous>, transform_indices = @transform_7, window_bounds = array<i64: 1, 1>}]} {
    %c0_i32 = arith.constant 0 : i32
    %0 = arith.cmpi eq, %arg0, %c0_i32 : i32
    %1 = arith.extui %0 : i1 to i32
    %c0_i32_0 = arith.constant 0 : i32
    %2 = arith.cmpi ne, %1, %c0_i32_0 : i32
    scf.if %2 {
      %cst_34 = arith.constant 0.000000e+00 : f32
      %64 = vector.broadcast %cst_34 : f32 to vector<1x1xf32>
      %c0_35 = arith.constant 0 : index
      %c0_36 = arith.constant 0 : index
      %65 = vector.load %arg7[%c0_35, %c0_36] : memref<1x1xf32, #tpu.memory_space<vmem>>, vector<1x1xf32>
      tpu.vector_store %arg7[%c0_35, %c0_36], %64 {strides = array<i32>} : memref<1x1xf32, #tpu.memory_space<vmem>>, vector<1x1xf32>,
      %cst_37 = arith.constant 0.000000e+00 : f32
      %66 = vector.broadcast %cst_37 : f32 to vector<1x1xf32>
      %c0_38 = arith.constant 0 : index
      %c0_39 = arith.constant 0 : index
      %67 = vector.load %arg8[%c0_38, %c0_39] : memref<1x1xf32, #tpu.memory_space<vmem>>, vector<1x1xf32>
      tpu.vector_store %arg8[%c0_38, %c0_39], %66 {strides = array<i32>} : memref<1x1xf32, #tpu.memory_space<vmem>>, vector<1x1xf32>,
    } else {
    }
    %c0 = arith.constant 0 : index
    %c0_1 = arith.constant 0 : index
    %3 = vector.load %arg1[%c0, %c0_1] : memref<8x8xf32, #tpu.memory_space<vmem>>, vector<8x8xf32>
    %c0_2 = arith.constant 0 : index
    %c0_3 = arith.constant 0 : index
    %4 = vector.load %arg2[%c0_2, %c0_3] : memref<8x32xf32, #tpu.memory_space<vmem>>, vector<8x32xf32>
    %c0_4 = arith.constant 0 : index
    %c0_5 = arith.constant 0 : index
    %5 = vector.load %arg3[%c0_4, %c0_5] : memref<8x32xf32, #tpu.memory_space<vmem>>, vector<8x32xf32>
    %c0_6 = arith.constant 0 : index
    %c0_7 = arith.constant 0 : index
    %6 = vector.load %arg5[%c0_6, %c0_7] : memref<1x24xf32, #tpu.memory_space<vmem>>, vector<1x24xf32>
    %c0_8 = arith.constant 0 : index
    %c0_9 = arith.constant 0 : index
    %7 = vector.load %arg6[%c0_8, %c0_9] : memref<8x1xf32, #tpu.memory_space<vmem>>, vector<8x1xf32>
    %cst = arith.constant dense<0xFF800000> : vector<8xf32>
    %8 = vector.multi_reduction <maximumf>, %3, %cst [1] : vector<8x8xf32> to vector<8xf32>
    %9 = vector.shape_cast %8 : vector<8xf32> to vector<8x1xf32>
    %10 = vector.broadcast %9 : vector<8x1xf32> to vector<8x8xf32>
    %11 = arith.subf %3, %10 : vector<8x8xf32>
    %12 = math.exp %11 : vector<8x8xf32>
    %cst_10 = arith.constant dense<0.000000e+00> : vector<8xf32>
    %13 = vector.multi_reduction <add>, %12, %cst_10 [1] : vector<8x8xf32> to vector<8xf32>
    %14 = vector.shape_cast %13 : vector<8xf32> to vector<8x1xf32>
    %15 = vector.broadcast %14 : vector<8x1xf32> to vector<8x8xf32>
    %16 = arith.divf %12, %15 : vector<8x8xf32>
    %cst_11 = arith.constant dense<0.000000e+00> : vector<8x32xf32>
    %17 = tpu.matmul %16, %4, %cst_11 {dimension_numbers = #tpu.dot_dimension_numbers<[1], [0], [0], [1], [0, 0, 1, 1], [], []>} : vector<8x8xf32>, vector<8x32xf32>, vector<8x32xf32> -> vector<8x32xf32>
    %18 = arith.addf %17, %5 : vector<8x32xf32>
    %c0_12 = arith.constant 0 : index
    %c0_13 = arith.constant 0 : index
    %c0_14 = arith.constant 0 : index
    %19 = vector.load %arg4[%c0_12, %c0_13, %c0_14] : memref<8x24x32xbf16, #tpu.memory_space<vmem>>, vector<8x24x32xbf16>
    %20 = arith.extf %19 : vector<8x24x32xbf16> to vector<8x24x32xf32>
    %21 = vector.shape_cast %18 : vector<8x32xf32> to vector<8x1x32xf32>
    %22 = vector.broadcast %21 : vector<8x1x32xf32> to vector<8x24x32xf32>
    %23 = arith.mulf %20, %22 : vector<8x24x32xf32>
    %cst_15 = arith.constant dense<0.000000e+00> : vector<8x24xf32>
    %24 = vector.multi_reduction <add>, %23, %cst_15 [2] : vector<8x24x32xf32> to vector<8x24xf32>
    %25 = vector.broadcast %6 : vector<1x24xf32> to vector<8x24xf32>
    %26 = arith.mulf %24, %25 : vector<8x24xf32>
    %cst_16 = arith.constant 0.000000e+00 : f32
    %27 = vector.broadcast %cst_16 : f32 to vector<8x24xf32>
    %28 = arith.minimumf %26, %27 : vector<8x24xf32>
    %29 = math.absf %26 : vector<8x24xf32>
    %cst_17 = arith.constant 0.000000e+00 : f32
    %30 = vector.broadcast %cst_17 : f32 to vector<8x24xf32>
    %31 = arith.subf %30, %29 : vector<8x24xf32>
    %32 = math.exp %31 : vector<8x24xf32>
    %cst_18 = arith.constant 1.000000e+00 : f32
    %33 = vector.broadcast %cst_18 : f32 to vector<8x24xf32>
    %34 = arith.addf %33, %32 : vector<8x24xf32>
    %35 = math.log %34 : vector<8x24xf32>
    %36 = arith.subf %28, %35 : vector<8x24xf32>
    %cst_19 = arith.constant -20.7232666 : f32
    %37 = vector.broadcast %cst_19 : f32 to vector<8x24xf32>
    %38 = arith.maximumf %36, %37 : vector<8x24xf32>
    %cst_20 = arith.constant dense<0.000000e+00> : vector<8xf32>
    %39 = vector.multi_reduction <add>, %38, %cst_20 [1] : vector<8x24xf32> to vector<8xf32>
    %40 = vector.shape_cast %39 : vector<8xf32> to vector<8x1xf32>
    %41 = vector.broadcast %9 : vector<8x1xf32> to vector<8x8xf32>
    %42 = arith.subf %3, %41 : vector<8x8xf32>
    %43 = math.log %14 : vector<8x1xf32>
    %44 = vector.broadcast %43 : vector<8x1xf32> to vector<8x8xf32>
    %45 = arith.subf %42, %44 : vector<8x8xf32>
    %cst_21 = arith.constant dense<0.000000e+00> : vector<8xf32>
    %46 = vector.multi_reduction <add>, %45, %cst_21 [1] : vector<8x8xf32> to vector<8xf32>
    %47 = vector.shape_cast %46 : vector<8xf32> to vector<8x1xf32>
    %c0_22 = arith.constant 0 : index
    %c0_23 = arith.constant 0 : index
    %48 = vector.load %arg7[%c0_22, %c0_23] : memref<1x1xf32, #tpu.memory_space<vmem>>, vector<1x1xf32>
    %49 = arith.mulf %7, %40 : vector<8x1xf32>
    %cst_24 = arith.constant dense<0.000000e+00> : vector<1xf32>
    %50 = vector.multi_reduction <add>, %49, %cst_24 [0] : vector<8x1xf32> to vector<1xf32>
    %51 = vector.shape_cast %50 : vector<1xf32> to vector<1x1xf32>
    %cst_25 = arith.constant 0.000000e+00 : f32
    %52 = vector.broadcast %cst_25 : f32 to vector<1x1xf32>
    %53 = arith.subf %52, %51 : vector<1x1xf32>
    %54 = arith.addf %48, %53 : vector<1x1xf32>
    %c0_26 = arith.constant 0 : index
    %c0_27 = arith.constant 0 : index
    %55 = vector.load %arg7[%c0_26, %c0_27] : memref<1x1xf32, #tpu.memory_space<vmem>>, vector<1x1xf32>
    tpu.vector_store %arg7[%c0_26, %c0_27], %54 {strides = array<i32>} : memref<1x1xf32, #tpu.memory_space<vmem>>, vector<1x1xf32>,
    %c0_28 = arith.constant 0 : index
    %c0_29 = arith.constant 0 : index
    %56 = vector.load %arg8[%c0_28, %c0_29] : memref<1x1xf32, #tpu.memory_space<vmem>>, vector<1x1xf32>
    %57 = arith.mulf %7, %47 : vector<8x1xf32>
    %cst_30 = arith.constant dense<0.000000e+00> : vector<1xf32>
    %58 = vector.multi_reduction <add>, %57, %cst_30 [0] : vector<8x1xf32> to vector<1xf32>
    %59 = vector.shape_cast %58 : vector<1xf32> to vector<1x1xf32>
    %cst_31 = arith.constant 8.750000e+01 : f32
    %60 = vector.broadcast %cst_31 : f32 to vector<1x1xf32>
    %61 = arith.mulf %60, %59 : vector<1x1xf32>
    %62 = arith.addf %56, %61 : vector<1x1xf32>
    %c0_32 = arith.constant 0 : index
    %c0_33 = arith.constant 0 : index
    %63 = vector.load %arg8[%c0_32, %c0_33] : memref<1x1xf32, #tpu.memory_space<vmem>>, vector<1x1xf32>
    tpu.vector_store %arg8[%c0_32, %c0_33], %62 {strides = array<i32>} : memref<1x1xf32, #tpu.memory_space<vmem>>, vector<1x1xf32>,
    return
  }
  func.func @transform_0(%arg0: i32) -> (i32, i32) {
    %c0_i32 = arith.constant 0 : i32
    %c0_i32_0 = arith.constant 0 : i32
    return %arg0, %c0_i32 : i32, i32
  }
  func.func @transform_1(%arg0: i32) -> (i32, i32) {
    %c0_i32 = arith.constant 0 : i32
    %c0_i32_0 = arith.constant 0 : i32
    %c0_i32_1 = arith.constant 0 : i32
    return %c0_i32, %c0_i32_0 : i32, i32
  }
  func.func @transform_2(%arg0: i32) -> (i32, i32) {
    %c0_i32 = arith.constant 0 : i32
    %c0_i32_0 = arith.constant 0 : i32
    return %arg0, %c0_i32 : i32, i32
  }
  func.func @transform_3(%arg0: i32) -> (i32, i32, i32) {
    %c0_i32 = arith.constant 0 : i32
    %c0_i32_0 = arith.constant 0 : i32
    %c0_i32_1 = arith.constant 0 : i32
    return %arg0, %c0_i32, %c0_i32_0 : i32, i32, i32
  }
  func.func @transform_4(%arg0: i32) -> (i32, i32) {
    %c0_i32 = arith.constant 0 : i32
    %c0_i32_0 = arith.constant 0 : i32
    %c0_i32_1 = arith.constant 0 : i32
    return %c0_i32, %c0_i32_0 : i32, i32
  }
  func.func @transform_5(%arg0: i32) -> (i32, i32) {
    %c0_i32 = arith.constant 0 : i32
    %c0_i32_0 = arith.constant 0 : i32
    return %arg0, %c0_i32 : i32, i32
  }
  func.func @transform_6(%arg0: i32) -> (i32, i32) {
    %c0_i32 = arith.constant 0 : i32
    %c0_i32_0 = arith.constant 0 : i32
    %c0_i32_1 = arith.constant 0 : i32
    return %c0_i32, %c0_i32_0 : i32, i32
  }
  func.func @transform_7(%arg0: i32) -> (i32, i32) {
    %c0_i32 = arith.constant 0 : i32
    %c0_i32_0 = arith.constant 0 : i32
    %c0_i32_1 = arith.constant 0 : i32
    return %c0_i32, %c0_i32_0 : i32, i32
  }
}

</mosaic_0001>

<llo_original>
// kernel: tpu_custom_call.1
$region0: #{tpu_custom_call.1}
  #allocation0 [shape = 'u32[]', space=smem, size = 0x4, offset = 0x4, fixed_abs, tag = 'smem constant byte address 0x4 - core index']
  #allocation1 [shape = 'u32[144,128]{1,0:T(1,128)}', space=vmem, size = 0x12000, scoped, tag = 'internal scratch']
  %s0 = inlined_call_operand.vmem [shape: f32[24,8], index: 0, kind: input, shape index: {}]
  %s1 = inlined_call_operand.vmem [shape: f32[8,32], index: 1, kind: input, shape index: {}]
  %s2 = inlined_call_operand.vmem [shape: f32[24,32], index: 2, kind: input, shape index: {}]
  %s3 = inlined_call_operand.hbm [shape: bf16[24,24,32], index: 3, kind: input, shape index: {}]
  %s4 = inlined_call_operand.vmem [shape: f32[1,24], index: 4, kind: input, shape index: {}]
  %s5 = inlined_call_operand.vmem [shape: f32[24,1], index: 5, kind: input, shape index: {}]
  %s6 = inlined_call_operand.hbm [shape: f32[1,1], index: 6, kind: output, shape index: {0}]
  %s7 = inlined_call_operand.hbm [shape: f32[1,1], index: 7, kind: output, shape index: {1}]
  %8 = xla_tuple %s6, %s7
  %s9 = sld [smem:[#allocation0]]
  $region73: #{tpu_custom_call.1} parent=0
    _
  %s11 = ssub.s32 1, %s9
  %s12 = scalar_select 0, %s11, %s9
  $region1: #{tpu_custom_call.1} parent=0
    #allocation2 [shape = 'u8[98304]{0}', space=vmem, size = 0x18000, scoped, tag = 'input window, operand 3']
    #allocation3 [shape = 's32[2]{0}', space=sflag, size = 0x8, scoped, tag = 'scoped memory for tpu_custom_call.1']
    #allocation4 [shape = 's32[2]{0}', space=sflag, size = 0x8, scoped, tag = 'scoped memory for tpu_custom_call.1']
    #allocation5 [shape = 'u8[512]{0}', space=vmem, size = 0x400, scoped, tag = 'output window, operand 0, single buffered']
    #allocation6 [shape = 'u8[512]{0}', space=vmem, size = 0x400, scoped, tag = 'output window, operand 1, single buffered']
    #allocation7 [shape = 's32[1]{0}', space=sflag, size = 0x4, scoped, tag = 'scoped memory for tpu_custom_call.1']
    %13 = vsyncpa [#allocation3], 0
    %s14 = scalar_lea.sflag [#allocation3], 1
    %15 = vsyncpa %s14, 0
    %16 = vsyncpa [#allocation4], 0
    %17 = vsyncpa [#allocation7], 0
    loop: start=0, step=1, limit=5
    $region2: #{tpu_custom_call.1} parent=1 // loop_pre_header
      _
    $region3: #{tpu_custom_call.1} parent=1 // loop_header
      %s19 = sphi 0, %s23
      %p20 = scmp.ge.s32.totalorder %s19, 5
      %s29 = sphi 0, %s31
      %s32 = sphi 0, %s29
      %s33 = sphi 0, %s32
      %s49 = sphi 0, %s33
      %s53 = sphi 0, %s53
      %s55 = sphi 0, %s53
      %s56 = sphi 0, %s55
      %s70 = sphi 0, %s56
      %s76 = sphi 0, %s78
      %s79 = sphi 0, %s76
      %s80 = sphi 0, %s79
      %s96 = sphi 0, %s80
      %s102 = sphi 0, %s104
      %s105 = sphi 0, %s102
      %s106 = sphi 0, %s105
      %s122 = sphi 0, %s106
      %s126 = sphi 0, %s126
      %s128 = sphi 0, %s126
      %s129 = sphi 0, %s128
      %s143 = sphi 0, %s129
      %s149 = sphi 0, %s151
      %s152 = sphi 0, %s149
      %s153 = sphi 0, %s152
      %s169 = sphi 0, %s153
      %s173 = sphi 0, %s173
      %s175 = sphi 0, %s173
      %s176 = sphi 0, %s175
      %s190 = sphi 0, %s176
      %s194 = sphi 0, %s194
      %s196 = sphi 0, %s194
      %s197 = sphi 0, %s196
      %s211 = sphi 0, %s197
    $region4: #{tpu_custom_call.1} parent=1 // loop_header_branch
      %22 = sbr.rel (%p20) target = $region8
    $region5: #{tpu_custom_call.1} parent=1 // loop_body
      %s24 = ssub.s32 %s19, 1
      %s25 = ssub.s32 %s19, 2
      %s26 = sadd.s32 %s19, 1
      %s27 = ssub.s32 %s19, %s26
      %p28 = scmp.eq.s32.totalorder %s27, 0
      %s30 = sadd.s32 %s29, 1
      %s31 = scalar_select %p28, %s29, %s30
      %p34 = pneg %p28
      %p35 = scmp.eq.s32.totalorder %s19, 2
      %p36 = por %p34, %p35
      %p37 = scmp.ne.s32.totalorder %s29, %s32
      %p38 = scmp.eq.s32.totalorder %s19, 0
      %p39 = por %p37, %p38
      %p40 = scmp.ne.s32.totalorder %s29, %s32
      %p41 = scmp.eq.s32.totalorder %s24, 2
      %p42 = por %p40, %p41
      %p43 = scmp.ne.s32.totalorder %s32, %s33
      %p44 = scmp.eq.s32.totalorder %s24, 0
      %p45 = por %p43, %p44
      %p46 = scmp.ne.s32.totalorder %s32, %s33
      %p47 = scmp.eq.s32.totalorder %s25, 2
      %p48 = por %p46, %p47
      %p50 = scmp.ne.s32.totalorder %s33, %s49
      %p51 = scmp.eq.s32.totalorder %s25, 0
      %p52 = por %p50, %p51
      %s54 = sadd.s32 %s53, 1
      %p57 = scmp.eq.s32.totalorder %s19, 2
      %p58 = scmp.ne.s32.totalorder %s53, %s55
      %p59 = scmp.eq.s32.totalorder %s19, 0
      %p60 = por %p58, %p59
      %p61 = scmp.ne.s32.totalorder %s53, %s55
      %p62 = scmp.eq.s32.totalorder %s24, 2
      %p63 = por %p61, %p62
      %p64 = scmp.ne.s32.totalorder %s55, %s56
      %p65 = scmp.eq.s32.totalorder %s24, 0
      %p66 = por %p64, %p65
      %p67 = scmp.ne.s32.totalorder %s55, %s56
      %p68 = scmp.eq.s32.totalorder %s25, 2
      %p69 = por %p67, %p68
      %p71 = scmp.ne.s32.totalorder %s56, %s70
      %p72 = scmp.eq.s32.totalorder %s25, 0
      %p73 = por %p71, %p72
      %s74 = ssub.s32 %s19, %s26
      %p75 = scmp.eq.s32.totalorder %s74, 0
      %s77 = sadd.s32 %s76, 1
      %s78 = scalar_select %p75, %s76, %s77
      %p81 = pneg %p75
      %p82 = scmp.eq.s32.totalorder %s19, 2
      %p83 = por %p81, %p82
      %p84 = scmp.ne.s32.totalorder %s76, %s79
      %p85 = scmp.eq.s32.totalorder %s19, 0
      %p86 = por %p84, %p85
      %p87 = scmp.ne.s32.totalorder %s76, %s79
      %p88 = scmp.eq.s32.totalorder %s24, 2
      %p89 = por %p87, %p88
      %p90 = scmp.ne.s32.totalorder %s79, %s80
      %p91 = scmp.eq.s32.totalorder %s24, 0
      %p92 = por %p90, %p91
      %p93 = scmp.ne.s32.totalorder %s79, %s80
      %p94 = scmp.eq.s32.totalorder %s25, 2
      %p95 = por %p93, %p94
      %p97 = scmp.ne.s32.totalorder %s80, %s96
      %p98 = scmp.eq.s32.totalorder %s25, 0
      %p99 = por %p97, %p98
      %s100 = ssub.s32 %s19, %s26
      %p101 = scmp.eq.s32.totalorder %s100, 0
      %s103 = sadd.s32 %s102, 1
      %s104 = scalar_select %p101, %s102, %s103
      %p107 = pneg %p101
      %p108 = scmp.eq.s32.totalorder %s19, 2
      %p109 = por %p107, %p108
      %p110 = scmp.ne.s32.totalorder %s102, %s105
      %p111 = scmp.eq.s32.totalorder %s19, 0
      %p112 = por %p110, %p111
      %p113 = scmp.ne.s32.totalorder %s102, %s105
      %p114 = scmp.eq.s32.totalorder %s24, 2
      %p115 = por %p113, %p114
      %p116 = scmp.ne.s32.totalorder %s105, %s106
      %p117 = scmp.eq.s32.totalorder %s24, 0
      %p118 = por %p116, %p117
      %p119 = scmp.ne.s32.totalorder %s105, %s106
      %p120 = scmp.eq.s32.totalorder %s25, 2
      %p121 = por %p119, %p120
      %p123 = scmp.ne.s32.totalorder %s106, %s122
      %p124 = scmp.eq.s32.totalorder %s25, 0
      %p125 = por %p123, %p124
      %s127 = sadd.s32 %s126, 1
      %p130 = scmp.eq.s32.totalorder %s19, 2
      %p131 = scmp.ne.s32.totalorder %s126, %s128
      %p132 = scmp.eq.s32.totalorder %s19, 0
      %p133 = por %p131, %p132
      %p134 = scmp.ne.s32.totalorder %s126, %s128
      %p135 = scmp.eq.s32.totalorder %s24, 2
      %p136 = por %p134, %p135
      %p137 = scmp.ne.s32.totalorder %s128, %s129
      %p138 = scmp.eq.s32.totalorder %s24, 0
      %p139 = por %p137, %p138
      %p140 = scmp.ne.s32.totalorder %s128, %s129
      %p141 = scmp.eq.s32.totalorder %s25, 2
      %p142 = por %p140, %p141
      %p144 = scmp.ne.s32.totalorder %s129, %s143
      %p145 = scmp.eq.s32.totalorder %s25, 0
      %p146 = por %p144, %p145
      %s147 = ssub.s32 %s19, %s26
      %p148 = scmp.eq.s32.totalorder %s147, 0
      %s150 = sadd.s32 %s149, 1
      %s151 = scalar_select %p148, %s149, %s150
      %p154 = pneg %p148
      %p155 = scmp.eq.s32.totalorder %s19, 2
      %p156 = por %p154, %p155
      %p157 = scmp.ne.s32.totalorder %s149, %s152
      %p158 = scmp.eq.s32.totalorder %s19, 0
      %p159 = por %p157, %p158
      %p160 = scmp.ne.s32.totalorder %s149, %s152
      %p161 = scmp.eq.s32.totalorder %s24, 2
      %p162 = por %p160, %p161
      %p163 = scmp.ne.s32.totalorder %s152, %s153
      %p164 = scmp.eq.s32.totalorder %s24, 0
      %p165 = por %p163, %p164
      %p166 = scmp.ne.s32.totalorder %s152, %s153
      %p167 = scmp.eq.s32.totalorder %s25, 2
      %p168 = por %p166, %p167
      %p170 = scmp.ne.s32.totalorder %s153, %s169
      %p171 = scmp.eq.s32.totalorder %s25, 0
      %p172 = por %p170, %p171
      %s174 = sadd.s32 %s173, 1
      %p177 = scmp.eq.s32.totalorder %s19, 2
      %p178 = scmp.ne.s32.totalorder %s173, %s175
      %p179 = scmp.eq.s32.totalorder %s19, 0
      %p180 = por %p178, %p179
      %p181 = scmp.ne.s32.totalorder %s173, %s175
      %p182 = scmp.eq.s32.totalorder %s24, 2
      %p183 = por %p181, %p182
      %p184 = scmp.ne.s32.totalorder %s175, %s176
      %p185 = scmp.eq.s32.totalorder %s24, 0
      %p186 = por %p184, %p185
      %p187 = scmp.ne.s32.totalorder %s175, %s176
      %p188 = scmp.eq.s32.totalorder %s25, 2
      %p189 = por %p187, %p188
      %p191 = scmp.ne.s32.totalorder %s176, %s190
      %p192 = scmp.eq.s32.totalorder %s25, 0
      %p193 = por %p191, %p192
      %s195 = sadd.s32 %s194, 1
      %p198 = scmp.eq.s32.totalorder %s19, 2
      %p199 = scmp.ne.s32.totalorder %s194, %s196
      %p200 = scmp.eq.s32.totalorder %s19, 0
      %p201 = por %p199, %p200
      %p202 = scmp.ne.s32.totalorder %s194, %s196
      %p203 = scmp.eq.s32.totalorder %s24, 2
      %p204 = por %p202, %p203
      %p205 = scmp.ne.s32.totalorder %s196, %s197
      %p206 = scmp.eq.s32.totalorder %s24, 0
      %p207 = por %p205, %p206
      %p208 = scmp.ne.s32.totalorder %s196, %s197
      %p209 = scmp.eq.s32.totalorder %s25, 2
      %p210 = por %p208, %p209
      %p212 = scmp.ne.s32.totalorder %s197, %s211
      %p213 = scmp.eq.s32.totalorder %s25, 0
      %p214 = por %p212, %p213
      %p215 = scmp.le.s32.totalorder 1, %s19
      %p216 = scmp.lt.s32.totalorder %s19, 4
      %p217 = pnand %p215, %p216
      %p218 = pneg %p217
      // Predicated region
      $region9: #{tpu_custom_call.1} parent=5 // pred_check
        _
      $region10: #{tpu_custom_call.1} parent=5 // pred_check_branch
        %220 = sbr.rel (%p217) target = $region12
      $region11: #{tpu_custom_call.1} parent=5 // pred_region
        %s221 = ssub.s32 %s19, 1
        // Predicated region
        $region13: #{tpu_custom_call.1} parent=11 // pred_check
          %p222 = pneg %p66
        $region14: #{tpu_custom_call.1} parent=11 // pred_check_branch
          %224 = sbr.rel (%p222) target = $region16
        $region15: #{tpu_custom_call.1} parent=11 // pred_region
          _
        $region16: #{tpu_custom_call.1} parent=11 // pred_fallthru
          _
        // Predicated region
        $region17: #{tpu_custom_call.1} parent=11 // pred_check
          %p225 = pneg %p139
        $region18: #{tpu_custom_call.1} parent=11 // pred_check_branch
          %227 = sbr.rel (%p225) target = $region20
        $region19: #{tpu_custom_call.1} parent=11 // pred_region
          _
        $region20: #{tpu_custom_call.1} parent=11 // pred_fallthru
          _
      $region12: #{tpu_custom_call.1} parent=5 // pred_fallthru
        _
      %p228 = scmp.lt.s32.totalorder %s19, 3
      // Predicated region
      $region21: #{tpu_custom_call.1} parent=5 // pred_check
        %p229 = pneg %p228
      $region22: #{tpu_custom_call.1} parent=5 // pred_check_branch
        %231 = sbr.rel (%p229) target = $region24
      $region23: #{tpu_custom_call.1} parent=5 // pred_region
        // Predicated region
        $region25: #{tpu_custom_call.1} parent=23 // pred_check
          %p232 = pneg %p39
        $region26: #{tpu_custom_call.1} parent=23 // pred_check_branch
          %234 = sbr.rel (%p232) target = $region28
        $region27: #{tpu_custom_call.1} parent=23 // pred_region
          %p235 = scmp.lt.s32.totalorder %s19, 2
          %s236 = scalar_select %p235, %s19, 2
          %s237 = smul.addr %s236, 8
          %s238 = scalar_lea.vmem %s0, %s237
        $region28: #{tpu_custom_call.1} parent=23 // pred_fallthru
          _
        // Predicated region
        $region29: #{tpu_custom_call.1} parent=23 // pred_check
          %p239 = pneg %p86
        $region30: #{tpu_custom_call.1} parent=23 // pred_check_branch
          %241 = sbr.rel (%p239) target = $region32
        $region31: #{tpu_custom_call.1} parent=23 // pred_region
          %p242 = scmp.lt.s32.totalorder %s19, 2
          %s243 = scalar_select %p242, %s19, 2
          %s244 = smul.addr %s243, 8
          %s245 = scalar_lea.vmem %s2, %s244
        $region32: #{tpu_custom_call.1} parent=23 // pred_fallthru
          _
        // Predicated region
        $region33: #{tpu_custom_call.1} parent=23 // pred_check
          %p246 = pneg %p112
        $region34: #{tpu_custom_call.1} parent=23 // pred_check_branch
          %248 = sbr.rel (%p246) target = $region36
        $region35: #{tpu_custom_call.1} parent=23 // pred_region
          %s249 = sand.u32 %s102, 1
          %s250 = scalar_lea.sflag [#allocation3], %s249
          %s251 = sand.u32 %s102, 1
          %s252 = smul.addr %s251, 96
          %s253 = scalar_lea.vmem [#allocation2], %s252
          %s254 = smul.u32 8, %s19
          %s256 = ssub.s32 1536, 1536
          %257 = vsyncadd %s250, %s256
          %s258 = smul.addr %s254, 3
          %s259 = smul.addr %s258, 64
          %s260 = scalar_lea.hbm %s3, %s259
          %s261 = sshll.u32 %s253, 4
          %s262 = int_to_ptr.vmem [resolvable:$true] %s261
          %267 = dma.hbm_to_vmem [thread:$0]  %s260, 1536, %s262, %s250, 64, 64, 4
        $region36: #{tpu_custom_call.1} parent=23 // pred_fallthru
          _
        // Predicated region
        $region37: #{tpu_custom_call.1} parent=23 // pred_check
          %p268 = pneg %p159
        $region38: #{tpu_custom_call.1} parent=23 // pred_check_branch
          %270 = sbr.rel (%p268) target = $region40
        $region39: #{tpu_custom_call.1} parent=23 // pred_region
          %p271 = scmp.lt.s32.totalorder %s19, 2
          %s272 = scalar_select %p271, %s19, 2
          %s273 = smul.addr %s272, 8
          %s274 = scalar_lea.vmem %s5, %s273
        $region40: #{tpu_custom_call.1} parent=23 // pred_fallthru
          _
      $region24: #{tpu_custom_call.1} parent=5 // pred_fallthru
        _
      %p275 = scmp.le.s32.totalorder 1, %s19
      %p276 = scmp.lt.s32.totalorder %s19, 4
      %p277 = pnand %p275, %p276
      %p278 = pneg %p277
      // Predicated region
      $region41: #{tpu_custom_call.1} parent=5 // pred_check
        _
      $region42: #{tpu_custom_call.1} parent=5 // pred_check_branch
        %280 = sbr.rel (%p277) target = $region44
      $region43: #{tpu_custom_call.1} parent=5 // pred_region
        %s281 = ssub.s32 %s19, 1
        %s282 = sand.u32 %s105, 1
        %s283 = scalar_lea.sflag [#allocation3], %s282
        %s284 = sand.u32 %s105, 1
        %s285 = smul.addr %s284, 96
        %s286 = scalar_lea.vmem [#allocation2], %s285
        // Predicated region
        $region45: #{tpu_custom_call.1} parent=43 // pred_check
          %p287 = pneg %p118
        $region46: #{tpu_custom_call.1} parent=43 // pred_check_branch
          %289 = sbr.rel (%p287) target = $region48
        $region47: #{tpu_custom_call.1} parent=43 // pred_region
          %290 = dma.done %s283, 1536
        $region48: #{tpu_custom_call.1} parent=43 // pred_fallthru
          _
        %p291 = scmp.lt.s32.totalorder %s24, 2
        %s292 = scalar_select %p291, %s24, 2
        %s293 = smul.addr %s292, 8
        %s294 = scalar_lea.vmem %s0, %s293
        %p295 = pneg %p45
        %p296 = pneg %p42
        %p297 = pneg %p66
        %p298 = pneg %p63
        %p299 = scmp.lt.s32.totalorder %s24, 2
        %s300 = scalar_select %p299, %s24, 2
        %s301 = smul.addr %s300, 8
        %s302 = scalar_lea.vmem %s2, %s301
        %p303 = pneg %p92
        %p304 = pneg %p89
        %s305 = sand.u32 %s105, 1
        %s306 = scalar_lea.sflag [#allocation3], %s305
        %s307 = sand.u32 %s105, 1
        %s308 = smul.addr %s307, 96
        %s309 = scalar_lea.vmem [#allocation2], %s308
        %p310 = pneg %p118
        %p311 = pneg %p115
        %p312 = pneg %p139
        %p313 = pneg %p136
        %p314 = scmp.lt.s32.totalorder %s24, 2
        %s315 = scalar_select %p314, %s24, 2
        %s316 = smul.addr %s315, 8
        %s317 = scalar_lea.vmem %s5, %s316
        %p318 = pneg %p165
        %p319 = pneg %p162
        %p320 = pneg %p186
        %p321 = pneg %p183
        %p322 = pneg %p207
        %p323 = pneg %p204
        %p324 = scmp.lt.s32.totalorder %s24, 2
        %s325 = scalar_select %p324, %s24, 2
        %s326 = smul.addr %s325, 8
        %s327 = scalar_lea.vmem %s0, %s326
        %p328 = scmp.lt.s32.totalorder %s24, 2
        %s329 = scalar_select %p328, %s24, 2
        %s330 = smul.addr %s329, 8
        %s331 = scalar_lea.vmem %s2, %s330
        %s332 = smul.u32 8, %s24
        %p333 = scmp.lt.s32.totalorder %s24, 2
        %s334 = scalar_select %p333, %s24, 2
        %s335 = smul.addr %s334, 8
        %s336 = scalar_lea.vmem %s5, %s335
        %p337 = scmp.eq.s32.totalorder %s24, 0
        // Predicated region
        $region49: #{tpu_custom_call.1} parent=43 // pred_check
          %p338 = pneg %p337
        $region50: #{tpu_custom_call.1} parent=43 // pred_check_branch
          %340 = sbr.rel (%p338) target = $region52
        $region51: #{tpu_custom_call.1} parent=43 // pred_region
          %vm341 = vcmask 0
          %342 = vst.msk [vmem:[#allocation5] sm:$0x1] %vm341, 0.0
          %343 = vst.msk [vmem:[#allocation6] sm:$0x1] %vm341, 0.0
        $region52: #{tpu_custom_call.1} parent=43 // pred_fallthru
          _
        %v344 = vld [vmem:[%s327] sm:$0xff]
        %v345 = vld [vmem:[%s1] sm:$0xff]
        %v346 = vld [vmem:[%s331] sm:$0xff]
        %v347 = vld [vmem:[%s4] sm:$0x1]
        %v348 = vld [vmem:[%s336] sm:$0xff]
        %vm349 = vcmask 64512
        %v350 = vsel %vm349, %v344, -inf
        %351 = vmax.xlane.f32.xlu0 %v350
        %v352 = vpop.xlane.xlu0 %351
        %v353 = vsub.f32 %v344, %v352
        %v354 = vmul.f32 %v353, 1.442695
        %v355 = vpow.pop %v354
        %v356 = vsel %vm349, %v355, 0.0
        %357 = vadd.xlane.f32.xlu0 %v356
        %v358 = vpop.xlane.xlu0 %357
        %v359 = vrcp.pop %v358
        %v360 = vmul.f32 %v355, %v359
        %v362 = vsel %vm349, %v360, 0
        %364 = vmatprep.subr.mxu0 0.0
        %365 = vmatpush1.msra.mxu0 %v345
        %366 = vmatprep.subr.mxu0 0.0
        %367 = vmatpush1.msra.mxu0 0.0
        %368 = vmatprep.subr.mxu0 0.0
        %369 = vmatpush1.msra.mxu0 0.0
        %370 = vmatprep.subr.mxu0 0.0
        %371 = vmatpush1.msra.mxu0 0.0
        %372 = vmatprep.subr.mxu0 0.0
        %373 = vmatpush1.msra.mxu0 0.0
        %374 = vmatprep.subr.mxu0 0.0
        %375 = vmatpush1.msra.mxu0 0.0
        %376 = vmatprep.subr.mxu0 0.0
        %377 = vmatpush1.msra.mxu0 0.0
        %378 = vmatprep.subr.mxu0 0.0
        %379 = vmatpush1.msra.mxu0 0.0
        %380 = vmatprep.subr.mxu0 0.0
        %381 = vmatpush1.msra.mxu0 0.0
        %382 = vmatprep.subr.mxu0 0.0
        %383 = vmatpush1.msra.mxu0 0.0
        %384 = vmatprep.subr.mxu0 0.0
        %385 = vmatpush1.msra.mxu0 0.0
        %386 = vmatprep.subr.mxu0 0.0
        %387 = vmatpush1.msra.mxu0 0.0
        %388 = vmatprep.subr.mxu0 0.0
        %389 = vmatpush1.msra.mxu0 0.0
        %390 = vmatprep.subr.mxu0 0.0
        %391 = vmatpush1.msra.mxu0 0.0
        %392 = vmatprep.subr.mxu0 0.0
        %393 = vmatpush1.msra.mxu0 0.0
        %394 = vmatprep.subr.mxu0 0.0
        %395 = vmatpush1.msra.mxu0 0.0
        %396 = vmatprep.subr.mxu0 0.0
        %397 = vmatpush1.msra.mxu0 0.0
        %398 = vmatprep.subr.mxu0 0.0
        %399 = vmatpush1.msra.mxu0 0.0
        %400 = vmatprep.subr.mxu0 0.0
        %401 = vmatpush1.msra.mxu0 0.0
        %402 = vmatprep.subr.mxu0 0.0
        %403 = vmatpush1.msra.mxu0 0.0
        %404 = vmatprep.subr.mxu0 0.0
        %405 = vmatpush1.msra.mxu0 0.0
        %406 = vmatprep.subr.mxu0 0.0
        %407 = vmatpush1.msra.mxu0 0.0
        %408 = vmatprep.subr.mxu0 0.0
        %409 = vmatpush1.msra.mxu0 0.0
        %410 = vmatprep.subr.mxu0 0.0
        %411 = vmatpush1.msra.mxu0 0.0
        %412 = vmatprep.subr.mxu0 0.0
        %413 = vmatpush1.msra.mxu0 0.0
        %414 = vmatprep.subr.mxu0 0.0
        %415 = vmatpush1.msra.mxu0 0.0
        %416 = vmatprep.subr.mxu0 0.0
        %417 = vmatpush1.msra.mxu0 0.0
        %418 = vmatprep.subr.mxu0 0.0
        %419 = vmatpush1.msra.mxu0 0.0
        %420 = vmatprep.subr.mxu0 0.0
        %421 = vmatpush1.msra.mxu0 0.0
        %422 = vmatprep.subr.mxu0 0.0
        %423 = vmatpush1.msra.mxu0 0.0
        %424 = vmatprep.subr.mxu0 0.0
        %425 = vmatpush1.msra.mxu0 0.0
        %426 = vmatprep.subr.mxu0 0.0
        %427 = vmatpush1.msra.mxu0 0.0
        %428 = vmatprep.mubr.f32.mxu0 0.0
        %429 = vmatmul.mubr.f32.gmra.mrb[0].mxu0 %v362
        %v430 = vpop.f32.mrb[0].mxu0
        %v431 = vadd.f32 %v346, %v430
        %v432 = vpop.f32.mrb[0].mxu0
        %433 = vdwg.mxu0
        %v434 = vld [vmem:[%s286] sm:$0xf]
        %v435 = vld [vmem:[%s286 + $0x4] sm:$0xf]
        %v436 = vld [vmem:[%s286 + $0x8] sm:$0xf]
        %v437 = vld [vmem:[%s286 + $0xc] sm:$0xf]
        %v438 = vld [vmem:[%s286 + $0x10] sm:$0xf]
        %v439 = vld [vmem:[%s286 + $0x14] sm:$0xf]
        %v440 = vld [vmem:[%s286 + $0x18] sm:$0xf]
        %v441 = vld [vmem:[%s286 + $0x1c] sm:$0xf]
        %v442 = vld [vmem:[%s286 + $0x20] sm:$0xf]
        %v443 = vld [vmem:[%s286 + $0x24] sm:$0xf]
        %v444 = vld [vmem:[%s286 + $0x28] sm:$0xf]
        %v445 = vld [vmem:[%s286 + $0x2c] sm:$0xf]
        %v446 = vld [vmem:[%s286 + $0x30] sm:$0xf]
        %v447 = vld [vmem:[%s286 + $0x34] sm:$0xf]
        %v448 = vld [vmem:[%s286 + $0x38] sm:$0xf]
        %v449 = vld [vmem:[%s286 + $0x3c] sm:$0xf]
        %v450 = vld [vmem:[%s286 + $0x40] sm:$0xf]
        %v451 = vld [vmem:[%s286 + $0x44] sm:$0xf]
        %v452 = vld [vmem:[%s286 + $0x48] sm:$0xf]
        %v453 = vld [vmem:[%s286 + $0x4c] sm:$0xf]
        %v454 = vld [vmem:[%s286 + $0x50] sm:$0xf]
        %v455 = vld [vmem:[%s286 + $0x54] sm:$0xf]
        %v456 = vld [vmem:[%s286 + $0x58] sm:$0xf]
        %v457 = vld [vmem:[%s286 + $0x5c] sm:$0xf]
        %v458 = vunpack.c.l.bf16 %v434
        %v459 = vunpack.c.l.bf16 %v435
        %v460 = vunpack.c.l.bf16 %v436
        %v461 = vunpack.c.l.bf16 %v437
        %v462 = vunpack.c.l.bf16 %v438
        %v463 = vunpack.c.l.bf16 %v439
        %v464 = vunpack.c.l.bf16 %v440
        %v465 = vunpack.c.l.bf16 %v441
        %v466 = vunpack.c.l.bf16 %v442
        %v467 = vunpack.c.l.bf16 %v443
        %v468 = vunpack.c.l.bf16 %v444
        %v469 = vunpack.c.l.bf16 %v445
        %v470 = vunpack.c.l.bf16 %v446
        %v471 = vunpack.c.l.bf16 %v447
        %v472 = vunpack.c.l.bf16 %v448
        %v473 = vunpack.c.l.bf16 %v449
        %v474 = vunpack.c.l.bf16 %v450
        %v475 = vunpack.c.l.bf16 %v451
        %v476 = vunpack.c.l.bf16 %v452
        %v477 = vunpack.c.l.bf16 %v453
        %v478 = vunpack.c.l.bf16 %v454
        %v479 = vunpack.c.l.bf16 %v455
        %v480 = vunpack.c.l.bf16 %v456
        %v481 = vunpack.c.l.bf16 %v457
        %v483 = vcombine.high %v431, %v431
        %v485 = vunpack.c.l.s4 1966171168
        %v486 = vunpack.c.0.s8 %v485
        %v487 = vlaneseq
        %v488 = vshrl.u32 %v487, 7
        %v489 = vsub.s32 %v486, %v488
        %v490 = vrot.slane %v431, %v489
        %v492 = vunpack.c.l.s4 1966171168
        %v493 = vunpack.c.0.s8 %v492
        %v494 = vlaneseq
        %v495 = vshrl.u32 %v494, 7
        %v496 = vsub.s32 %v493, %v495
        %v497 = vrot.slane %v483, %v496
        %v498 = vcombine.high %v490, %v490
        %v499 = vcombine.high %v497, %v497
        %v501 = vunpack.c.l.s4 1966171168
        %v502 = vunpack.c.0.s8 %v501
        %v503 = vlaneseq
        %v504 = vshrl.u32 %v503, 7
        %v505 = vsub.s32 %v502, %v504
        %v506 = vrot.slane %v490, %v505
        %v508 = vunpack.c.l.s4 1966171168
        %v509 = vunpack.c.0.s8 %v508
        %v510 = vlaneseq
        %v511 = vshrl.u32 %v510, 7
        %v512 = vsub.s32 %v509, %v511
        %v513 = vrot.slane %v497, %v512
        %v515 = vunpack.c.l.s4 1966171168
        %v516 = vunpack.c.0.s8 %v515
        %v517 = vlaneseq
        %v518 = vshrl.u32 %v517, 7
        %v519 = vsub.s32 %v516, %v518
        %v520 = vrot.slane %v498, %v519
        %v522 = vunpack.c.l.s4 1966171168
        %v523 = vunpack.c.0.s8 %v522
        %v524 = vlaneseq
        %v525 = vshrl.u32 %v524, 7
        %v526 = vsub.s32 %v523, %v525
        %v527 = vrot.slane %v499, %v526
        %v528 = vcombine.high %v506, %v506
        %v529 = vcombine.high %v513, %v513
        %v530 = vcombine.high %v520, %v520
        %v531 = vcombine.high %v527, %v527
        %v532 = vlaneseq
        %v533 = vshrl.u32 %v532, 7
        %v534 = vsub.s32 0, %v533
        %v535 = vrot.slane %v506, %v534
        %v536 = vlaneseq
        %v537 = vshrl.u32 %v536, 7
        %v538 = vsub.s32 0, %v537
        %v539 = vrot.slane %v520, %v538
        %v540 = vlaneseq
        %v541 = vshrl.u32 %v540, 7
        %v542 = vsub.s32 0, %v541
        %v543 = vrot.slane %v528, %v542
        %v544 = vlaneseq
        %v545 = vshrl.u32 %v544, 7
        %v546 = vsub.s32 0, %v545
        %v547 = vrot.slane %v530, %v546
        %v548 = vlaneseq
        %v549 = vshrl.u32 %v548, 7
        %v550 = vsub.s32 0, %v549
        %v551 = vrot.slane %v513, %v550
        %v552 = vlaneseq
        %v553 = vshrl.u32 %v552, 7
        %v554 = vsub.s32 0, %v553
        %v555 = vrot.slane %v527, %v554
        %v556 = vlaneseq
        %v557 = vshrl.u32 %v556, 7
        %v558 = vsub.s32 0, %v557
        %v559 = vrot.slane %v529, %v558
        %v560 = vlaneseq
        %v561 = vshrl.u32 %v560, 7
        %v562 = vsub.s32 0, %v561
        %v563 = vrot.slane %v531, %v562
        %v572 = vmul.f32 %v458, %v535
        %v573 = vmul.f32 %v459, %v535
        %v574 = vmul.f32 %v460, %v535
        %v575 = vmul.f32 %v461, %v539
        %v576 = vmul.f32 %v462, %v539
        %v577 = vmul.f32 %v463, %v539
        %v578 = vmul.f32 %v464, %v543
        %v579 = vmul.f32 %v465, %v543
        %v580 = vmul.f32 %v466, %v543
        %v581 = vmul.f32 %v467, %v547
        %v582 = vmul.f32 %v468, %v547
        %v583 = vmul.f32 %v469, %v547
        %v584 = vmul.f32 %v470, %v551
        %v585 = vmul.f32 %v471, %v551
        %v586 = vmul.f32 %v472, %v551
        %v587 = vmul.f32 %v473, %v555
        %v588 = vmul.f32 %v474, %v555
        %v589 = vmul.f32 %v475, %v555
        %v590 = vmul.f32 %v476, %v559
        %v591 = vmul.f32 %v477, %v559
        %v592 = vmul.f32 %v478, %v559
        %v593 = vmul.f32 %v479, %v563
        %v594 = vmul.f32 %v480, %v563
        %v595 = vmul.f32 %v481, %v563
        %vm596 = vcmask 261120
        %v597 = vsel %vm596, %v572, 0.0
        %598 = vadd.xlane.f32.xlu0 %v597
        %v599 = vpop.xlane.xlu0 %598
        %v600 = vsel %vm596, %v573, 0.0
        %601 = vadd.xlane.f32.xlu0 %v600
        %v602 = vpop.xlane.xlu0 %601
        %v603 = vsel %vm596, %v574, 0.0
        %604 = vadd.xlane.f32.xlu0 %v603
        %v605 = vpop.xlane.xlu0 %604
        %v606 = vsel %vm596, %v575, 0.0
        %607 = vadd.xlane.f32.xlu0 %v606
        %v608 = vpop.xlane.xlu0 %607
        %v609 = vsel %vm596, %v576, 0.0
        %610 = vadd.xlane.f32.xlu0 %v609
        %v611 = vpop.xlane.xlu0 %610
        %v612 = vsel %vm596, %v577, 0.0
        %613 = vadd.xlane.f32.xlu0 %v612
        %v614 = vpop.xlane.xlu0 %613
        %v615 = vsel %vm596, %v578, 0.0
        %616 = vadd.xlane.f32.xlu0 %v615
        %v617 = vpop.xlane.xlu0 %616
        %v618 = vsel %vm596, %v579, 0.0
        %619 = vadd.xlane.f32.xlu0 %v618
        %v620 = vpop.xlane.xlu0 %619
        %v621 = vsel %vm596, %v580, 0.0
        %622 = vadd.xlane.f32.xlu0 %v621
        %v623 = vpop.xlane.xlu0 %622
        %v624 = vsel %vm596, %v581, 0.0
        %625 = vadd.xlane.f32.xlu0 %v624
        %v626 = vpop.xlane.xlu0 %625
        %v627 = vsel %vm596, %v582, 0.0
        %628 = vadd.xlane.f32.xlu0 %v627
        %v629 = vpop.xlane.xlu0 %628
        %v630 = vsel %vm596, %v583, 0.0
        %631 = vadd.xlane.f32.xlu0 %v630
        %v632 = vpop.xlane.xlu0 %631
        %v633 = vsel %vm596, %v584, 0.0
        %634 = vadd.xlane.f32.xlu0 %v633
        %v635 = vpop.xlane.xlu0 %634
        %v636 = vsel %vm596, %v585, 0.0
        %637 = vadd.xlane.f32.xlu0 %v636
        %v638 = vpop.xlane.xlu0 %637
        %v639 = vsel %vm596, %v586, 0.0
        %640 = vadd.xlane.f32.xlu0 %v639
        %v641 = vpop.xlane.xlu0 %640
        %v642 = vsel %vm596, %v587, 0.0
        %643 = vadd.xlane.f32.xlu0 %v642
        %v644 = vpop.xlane.xlu0 %643
        %v645 = vsel %vm596, %v588, 0.0
        %646 = vadd.xlane.f32.xlu0 %v645
        %v647 = vpop.xlane.xlu0 %646
        %v648 = vsel %vm596, %v589, 0.0
        %649 = vadd.xlane.f32.xlu0 %v648
        %v650 = vpop.xlane.xlu0 %649
        %v651 = vsel %vm596, %v590, 0.0
        %652 = vadd.xlane.f32.xlu0 %v651
        %v653 = vpop.xlane.xlu0 %652
        %v654 = vsel %vm596, %v591, 0.0
        %655 = vadd.xlane.f32.xlu0 %v654
        %v656 = vpop.xlane.xlu0 %655
        %v657 = vsel %vm596, %v592, 0.0
        %658 = vadd.xlane.f32.xlu0 %v657
        %v659 = vpop.xlane.xlu0 %658
        %v660 = vsel %vm596, %v593, 0.0
        %661 = vadd.xlane.f32.xlu0 %v660
        %v662 = vpop.xlane.xlu0 %661
        %v663 = vsel %vm596, %v594, 0.0
        %664 = vadd.xlane.f32.xlu0 %v663
        %v665 = vpop.xlane.xlu0 %664
        %v666 = vsel %vm596, %v595, 0.0
        %667 = vadd.xlane.f32.xlu0 %v666
        %v668 = vpop.xlane.xlu0 %667
        %v670 = vlaneseq
        %v671 = vshrl.u32 %v670, 7
        %v672 = vsub.s32 0, %v671
        %v673 = vrot.slane %v347, %v672
        %675 = vbcast.lane.b32.xlu0 %v673, 256
        %v676 = vpop.permute.xlu0 %675
        %s678 = sor.u32 256, 8
        %679 = vbcast.lane.b32.xlu0 %v673, %s678
        %v680 = vpop.permute.xlu0 %679
        %s682 = sor.u32 256, 16
        %683 = vbcast.lane.b32.xlu0 %v673, %s682
        %v684 = vpop.permute.xlu0 %683
        %v688 = vmul.f32 %v599, %v676
        %v689 = vmul.f32 %v602, %v680
        %v690 = vmul.f32 %v605, %v684
        %v691 = vmul.f32 %v608, %v676
        %v692 = vmul.f32 %v611, %v680
        %v693 = vmul.f32 %v614, %v684
        %v694 = vmul.f32 %v617, %v676
        %v695 = vmul.f32 %v620, %v680
        %v696 = vmul.f32 %v623, %v684
        %v697 = vmul.f32 %v626, %v676
        %v698 = vmul.f32 %v629, %v680
        %v699 = vmul.f32 %v632, %v684
        %v700 = vmul.f32 %v635, %v676
        %v701 = vmul.f32 %v638, %v680
        %v702 = vmul.f32 %v641, %v684
        %v703 = vmul.f32 %v644, %v676
        %v704 = vmul.f32 %v647, %v680
        %v705 = vmul.f32 %v650, %v684
        %v706 = vmul.f32 %v653, %v676
        %v707 = vmul.f32 %v656, %v680
        %v708 = vmul.f32 %v659, %v684
        %v709 = vmul.f32 %v662, %v676
        %v710 = vmul.f32 %v665, %v680
        %v711 = vmul.f32 %v668, %v684
        %v712 = vmin.f32 %v688, 0.0
        %v713 = vmin.f32 %v689, 0.0
        %v714 = vmin.f32 %v690, 0.0
        %v715 = vmin.f32 %v691, 0.0
        %v716 = vmin.f32 %v692, 0.0
        %v717 = vmin.f32 %v693, 0.0
        %v718 = vmin.f32 %v694, 0.0
        %v719 = vmin.f32 %v695, 0.0
        %v720 = vmin.f32 %v696, 0.0
        %v721 = vmin.f32 %v697, 0.0
        %v722 = vmin.f32 %v698, 0.0
        %v723 = vmin.f32 %v699, 0.0
        %v724 = vmin.f32 %v700, 0.0
        %v725 = vmin.f32 %v701, 0.0
        %v726 = vmin.f32 %v702, 0.0
        %v727 = vmin.f32 %v703, 0.0
        %v728 = vmin.f32 %v704, 0.0
        %v729 = vmin.f32 %v705, 0.0
        %v730 = vmin.f32 %v706, 0.0
        %v731 = vmin.f32 %v707, 0.0
        %v732 = vmin.f32 %v708, 0.0
        %v733 = vmin.f32 %v709, 0.0
        %v734 = vmin.f32 %v710, 0.0
        %v735 = vmin.f32 %v711, 0.0
        %v736 = vand.u32 2147483647, %v688
        %v737 = vand.u32 2147483647, %v689
        %v738 = vand.u32 2147483647, %v690
        %v739 = vand.u32 2147483647, %v691
        %v740 = vand.u32 2147483647, %v692
        %v741 = vand.u32 2147483647, %v693
        %v742 = vand.u32 2147483647, %v694
        %v743 = vand.u32 2147483647, %v695
        %v744 = vand.u32 2147483647, %v696
        %v745 = vand.u32 2147483647, %v697
        %v746 = vand.u32 2147483647, %v698
        %v747 = vand.u32 2147483647, %v699
        %v748 = vand.u32 2147483647, %v700
        %v749 = vand.u32 2147483647, %v701
        %v750 = vand.u32 2147483647, %v702
        %v751 = vand.u32 2147483647, %v703
        %v752 = vand.u32 2147483647, %v704
        %v753 = vand.u32 2147483647, %v705
        %v754 = vand.u32 2147483647, %v706
        %v755 = vand.u32 2147483647, %v707
        %v756 = vand.u32 2147483647, %v708
        %v757 = vand.u32 2147483647, %v709
        %v758 = vand.u32 2147483647, %v710
        %v759 = vand.u32 2147483647, %v711
        %v760 = vsub.f32 0.0, %v736
        %v761 = vsub.f32 0.0, %v737
        %v762 = vsub.f32 0.0, %v738
        %v763 = vsub.f32 0.0, %v739
        %v764 = vsub.f32 0.0, %v740
        %v765 = vsub.f32 0.0, %v741
        %v766 = vsub.f32 0.0, %v742
        %v767 = vsub.f32 0.0, %v743
        %v768 = vsub.f32 0.0, %v744
        %v769 = vsub.f32 0.0, %v745
        %v770 = vsub.f32 0.0, %v746
        %v771 = vsub.f32 0.0, %v747
        %v772 = vsub.f32 0.0, %v748
        %v773 = vsub.f32 0.0, %v749
        %v774 = vsub.f32 0.0, %v750
        %v775 = vsub.f32 0.0, %v751
        %v776 = vsub.f32 0.0, %v752
        %v777 = vsub.f32 0.0, %v753
        %v778 = vsub.f32 0.0, %v754
        %v779 = vsub.f32 0.0, %v755
        %v780 = vsub.f32 0.0, %v756
        %v781 = vsub.f32 0.0, %v757
        %v782 = vsub.f32 0.0, %v758
        %v783 = vsub.f32 0.0, %v759
        %v784 = vmul.f32 %v760, 1.442695
        %v785 = vpow.pop %v784
        %v786 = vmul.f32 %v761, 1.442695
        %v787 = vpow.pop %v786
        %v788 = vmul.f32 %v762, 1.442695
        %v789 = vpow.pop %v788
        %v790 = vmul.f32 %v763, 1.442695
        %v791 = vpow.pop %v790
        %v792 = vmul.f32 %v764, 1.442695
        %v793 = vpow.pop %v792
        %v794 = vmul.f32 %v765, 1.442695
        %v795 = vpow.pop %v794
        %v796 = vmul.f32 %v766, 1.442695
        %v797 = vpow.pop %v796
        %v798 = vmul.f32 %v767, 1.442695
        %v799 = vpow.pop %v798
        %v800 = vmul.f32 %v768, 1.442695
        %v801 = vpow.pop %v800
        %v802 = vmul.f32 %v769, 1.442695
        %v803 = vpow.pop %v802
        %v804 = vmul.f32 %v770, 1.442695
        %v805 = vpow.pop %v804
        %v806 = vmul.f32 %v771, 1.442695
        %v807 = vpow.pop %v806
        %v808 = vmul.f32 %v772, 1.442695
        %v809 = vpow.pop %v808
        %v810 = vmul.f32 %v773, 1.442695
        %v811 = vpow.pop %v810
        %v812 = vmul.f32 %v774, 1.442695
        %v813 = vpow.pop %v812
        %v814 = vmul.f32 %v775, 1.442695
        %v815 = vpow.pop %v814
        %v816 = vmul.f32 %v776, 1.442695
        %v817 = vpow.pop %v816
        %v818 = vmul.f32 %v777, 1.442695
        %v819 = vpow.pop %v818
        %v820 = vmul.f32 %v778, 1.442695
        %v821 = vpow.pop %v820
        %v822 = vmul.f32 %v779, 1.442695
        %v823 = vpow.pop %v822
        %v824 = vmul.f32 %v780, 1.442695
        %v825 = vpow.pop %v824
        %v826 = vmul.f32 %v781, 1.442695
        %v827 = vpow.pop %v826
        %v828 = vmul.f32 %v782, 1.442695
        %v829 = vpow.pop %v828
        %v830 = vmul.f32 %v783, 1.442695
        %v831 = vpow.pop %v830
        %v832 = vadd.f32 %v785, 1.0
        %v833 = vadd.f32 %v787, 1.0
        %v834 = vadd.f32 %v789, 1.0
        %v835 = vadd.f32 %v791, 1.0
        %v836 = vadd.f32 %v793, 1.0
        %v837 = vadd.f32 %v795, 1.0
        %v838 = vadd.f32 %v797, 1.0
        %v839 = vadd.f32 %v799, 1.0
        %v840 = vadd.f32 %v801, 1.0
        %v841 = vadd.f32 %v803, 1.0
        %v842 = vadd.f32 %v805, 1.0
        %v843 = vadd.f32 %v807, 1.0
        %v844 = vadd.f32 %v809, 1.0
        %v845 = vadd.f32 %v811, 1.0
        %v846 = vadd.f32 %v813, 1.0
        %v847 = vadd.f32 %v815, 1.0
        %v848 = vadd.f32 %v817, 1.0
        %v849 = vadd.f32 %v819, 1.0
        %v850 = vadd.f32 %v821, 1.0
        %v851 = vadd.f32 %v823, 1.0
        %v852 = vadd.f32 %v825, 1.0
        %v853 = vadd.f32 %v827, 1.0
        %v854 = vadd.f32 %v829, 1.0
        %v855 = vadd.f32 %v831, 1.0
        %v856 = vlog2.pop %v832
        %v857 = vmul.f32 %v856, 0.6931472
        %v858 = vlog2.pop %v833
        %v859 = vmul.f32 %v858, 0.6931472
        %v860 = vlog2.pop %v834
        %v861 = vmul.f32 %v860, 0.6931472
        %v862 = vlog2.pop %v835
        %v863 = vmul.f32 %v862, 0.6931472
        %v864 = vlog2.pop %v836
        %v865 = vmul.f32 %v864, 0.6931472
        %v866 = vlog2.pop %v837
        %v867 = vmul.f32 %v866, 0.6931472
        %v868 = vlog2.pop %v838
        %v869 = vmul.f32 %v868, 0.6931472
        %v870 = vlog2.pop %v839
        %v871 = vmul.f32 %v870, 0.6931472
        %v872 = vlog2.pop %v840
        %v873 = vmul.f32 %v872, 0.6931472
        %v874 = vlog2.pop %v841
        %v875 = vmul.f32 %v874, 0.6931472
        %v876 = vlog2.pop %v842
        %v877 = vmul.f32 %v876, 0.6931472
        %v878 = vlog2.pop %v843
        %v879 = vmul.f32 %v878, 0.6931472
        %v880 = vlog2.pop %v844
        %v881 = vmul.f32 %v880, 0.6931472
        %v882 = vlog2.pop %v845
        %v883 = vmul.f32 %v882, 0.6931472
        %v884 = vlog2.pop %v846
        %v885 = vmul.f32 %v884, 0.6931472
        %v886 = vlog2.pop %v847
        %v887 = vmul.f32 %v886, 0.6931472
        %v888 = vlog2.pop %v848
        %v889 = vmul.f32 %v888, 0.6931472
        %v890 = vlog2.pop %v849
        %v891 = vmul.f32 %v890, 0.6931472
        %v892 = vlog2.pop %v850
        %v893 = vmul.f32 %v892, 0.6931472
        %v894 = vlog2.pop %v851
        %v895 = vmul.f32 %v894, 0.6931472
        %v896 = vlog2.pop %v852
        %v897 = vmul.f32 %v896, 0.6931472
        %v898 = vlog2.pop %v853
        %v899 = vmul.f32 %v898, 0.6931472
        %v900 = vlog2.pop %v854
        %v901 = vmul.f32 %v900, 0.6931472
        %v902 = vlog2.pop %v855
        %v903 = vmul.f32 %v902, 0.6931472
        %v904 = vsub.f32 %v712, %v857
        %v905 = vsub.f32 %v713, %v859
        %v906 = vsub.f32 %v714, %v861
        %v907 = vsub.f32 %v715, %v863
        %v908 = vsub.f32 %v716, %v865
        %v909 = vsub.f32 %v717, %v867
        %v910 = vsub.f32 %v718, %v869
        %v911 = vsub.f32 %v719, %v871
        %v912 = vsub.f32 %v720, %v873
        %v913 = vsub.f32 %v721, %v875
        %v914 = vsub.f32 %v722, %v877
        %v915 = vsub.f32 %v723, %v879
        %v916 = vsub.f32 %v724, %v881
        %v917 = vsub.f32 %v725, %v883
        %v918 = vsub.f32 %v726, %v885
        %v919 = vsub.f32 %v727, %v887
        %v920 = vsub.f32 %v728, %v889
        %v921 = vsub.f32 %v729, %v891
        %v922 = vsub.f32 %v730, %v893
        %v923 = vsub.f32 %v731, %v895
        %v924 = vsub.f32 %v732, %v897
        %v925 = vsub.f32 %v733, %v899
        %v926 = vsub.f32 %v734, %v901
        %v927 = vsub.f32 %v735, %v903
        %v928 = vmax.f32 %v904, -20.723267
        %v929 = vmax.f32 %v905, -20.723267
        %v930 = vmax.f32 %v906, -20.723267
        %v931 = vmax.f32 %v907, -20.723267
        %v932 = vmax.f32 %v908, -20.723267
        %v933 = vmax.f32 %v909, -20.723267
        %v934 = vmax.f32 %v910, -20.723267
        %v935 = vmax.f32 %v911, -20.723267
        %v936 = vmax.f32 %v912, -20.723267
        %v937 = vmax.f32 %v913, -20.723267
        %v938 = vmax.f32 %v914, -20.723267
        %v939 = vmax.f32 %v915, -20.723267
        %v940 = vmax.f32 %v916, -20.723267
        %v941 = vmax.f32 %v917, -20.723267
        %v942 = vmax.f32 %v918, -20.723267
        %v943 = vmax.f32 %v919, -20.723267
        %v944 = vmax.f32 %v920, -20.723267
        %v945 = vmax.f32 %v921, -20.723267
        %v946 = vmax.f32 %v922, -20.723267
        %v947 = vmax.f32 %v923, -20.723267
        %v948 = vmax.f32 %v924, -20.723267
        %v949 = vmax.f32 %v925, -20.723267
        %v950 = vmax.f32 %v926, -20.723267
        %v951 = vmax.f32 %v927, -20.723267
        %976 = vset.pattern.permute.xlu0 0
        %977 = vperm.xlu0 %976, %v928
        %v978 = vpop.permute.xlu0 %977
        %979 = vset.pattern.permute.xlu0 0
        %980 = vperm.xlu0 %979, %v929
        %v981 = vpop.permute.xlu0 %980
        %982 = vset.pattern.permute.xlu0 0
        %983 = vperm.xlu0 %982, %v930
        %v984 = vpop.permute.xlu0 %983
        %985 = vset.pattern.permute.xlu0 0
        %986 = vperm.xlu0 %985, %v931
        %v987 = vpop.permute.xlu0 %986
        %988 = vset.pattern.permute.xlu0 0
        %989 = vperm.xlu0 %988, %v932
        %v990 = vpop.permute.xlu0 %989
        %991 = vset.pattern.permute.xlu0 0
        %992 = vperm.xlu0 %991, %v933
        %v993 = vpop.permute.xlu0 %992
        %994 = vset.pattern.permute.xlu0 0
        %995 = vperm.xlu0 %994, %v934
        %v996 = vpop.permute.xlu0 %995
        %997 = vset.pattern.permute.xlu0 0
        %998 = vperm.xlu0 %997, %v935
        %v999 = vpop.permute.xlu0 %998
        %1000 = vset.pattern.permute.xlu0 0
        %1001 = vperm.xlu0 %1000, %v936
        %v1002 = vpop.permute.xlu0 %1001
        %1003 = vset.pattern.permute.xlu0 0
        %1004 = vperm.xlu0 %1003, %v937
        %v1005 = vpop.permute.xlu0 %1004
        %1006 = vset.pattern.permute.xlu0 0
        %1007 = vperm.xlu0 %1006, %v938
        %v1008 = vpop.permute.xlu0 %1007
        %1009 = vset.pattern.permute.xlu0 0
        %1010 = vperm.xlu0 %1009, %v939
        %v1011 = vpop.permute.xlu0 %1010
        %1012 = vset.pattern.permute.xlu0 0
        %1013 = vperm.xlu0 %1012, %v940
        %v1014 = vpop.permute.xlu0 %1013
        %1015 = vset.pattern.permute.xlu0 0
        %1016 = vperm.xlu0 %1015, %v941
        %v1017 = vpop.permute.xlu0 %1016
        %1018 = vset.pattern.permute.xlu0 0
        %1019 = vperm.xlu0 %1018, %v942
        %v1020 = vpop.permute.xlu0 %1019
        %1021 = vset.pattern.permute.xlu0 0
        %1022 = vperm.xlu0 %1021, %v943
        %v1023 = vpop.permute.xlu0 %1022
        %1024 = vset.pattern.permute.xlu0 0
        %1025 = vperm.xlu0 %1024, %v944
        %v1026 = vpop.permute.xlu0 %1025
        %1027 = vset.pattern.permute.xlu0 0
        %1028 = vperm.xlu0 %1027, %v945
        %v1029 = vpop.permute.xlu0 %1028
        %1030 = vset.pattern.permute.xlu0 0
        %1031 = vperm.xlu0 %1030, %v946
        %v1032 = vpop.permute.xlu0 %1031
        %1033 = vset.pattern.permute.xlu0 0
        %1034 = vperm.xlu0 %1033, %v947
        %v1035 = vpop.permute.xlu0 %1034
        %1036 = vset.pattern.permute.xlu0 0
        %1037 = vperm.xlu0 %1036, %v948
        %v1038 = vpop.permute.xlu0 %1037
        %1039 = vset.pattern.permute.xlu0 0
        %1040 = vperm.xlu0 %1039, %v949
        %v1041 = vpop.permute.xlu0 %1040
        %1042 = vset.pattern.permute.xlu0 0
        %1043 = vperm.xlu0 %1042, %v950
        %v1044 = vpop.permute.xlu0 %1043
        %1045 = vset.pattern.permute.xlu0 0
        %1046 = vperm.xlu0 %1045, %v951
        %v1047 = vpop.permute.xlu0 %1046
        %v1048 = vlaneseq
        %v1049 = vand.u32 %v1048, 127
        %v1050 = vlaneseq
        %v1051 = vshrl.u32 %v1050, 7
        %v1052 = vsub.s32 %v1049, %v1051
        %v1053 = vrot.slane %v978, %v1052
        %v1054 = vadd.s32 %v1049, 4294967288
        %v1055 = vlaneseq
        %v1056 = vshrl.u32 %v1055, 7
        %v1057 = vsub.s32 %v1054, %v1056
        %v1058 = vrot.slane %v981, %v1057
        %vm1059 = vcmask 130112
        %v1060 = vsel %vm1059, %v1058, %v1053
        %v1061 = vadd.s32 %v1049, 4294967280
        %v1062 = vlaneseq
        %v1063 = vshrl.u32 %v1062, 7
        %v1064 = vsub.s32 %v1061, %v1063
        %v1065 = vrot.slane %v984, %v1064
        %vm1066 = vcmask 195712
        %v1067 = vsel %vm1066, %v1065, %v1060
        %v1068 = vlaneseq
        %v1069 = vshrl.u32 %v1068, 7
        %v1070 = vsub.s32 %v1049, %v1069
        %v1071 = vrot.slane %v987, %v1070
        %v1072 = vlaneseq
        %v1073 = vshrl.u32 %v1072, 7
        %v1074 = vsub.s32 %v1054, %v1073
        %v1075 = vrot.slane %v990, %v1074
        %v1076 = vsel %vm1059, %v1075, %v1071
        %v1077 = vlaneseq
        %v1078 = vshrl.u32 %v1077, 7
        %v1079 = vsub.s32 %v1061, %v1078
        %v1080 = vrot.slane %v993, %v1079
        %v1081 = vsel %vm1066, %v1080, %v1076
        %v1082 = vlaneseq
        %v1083 = vshrl.u32 %v1082, 7
        %v1084 = vsub.s32 %v1049, %v1083
        %v1085 = vrot.slane %v996, %v1084
        %v1086 = vlaneseq
        %v1087 = vshrl.u32 %v1086, 7
        %v1088 = vsub.s32 %v1054, %v1087
        %v1089 = vrot.slane %v999, %v1088
        %v1090 = vsel %vm1059, %v1089, %v1085
        %v1091 = vlaneseq
        %v1092 = vshrl.u32 %v1091, 7
        %v1093 = vsub.s32 %v1061, %v1092
        %v1094 = vrot.slane %v1002, %v1093
        %v1095 = vsel %vm1066, %v1094, %v1090
        %v1096 = vlaneseq
        %v1097 = vshrl.u32 %v1096, 7
        %v1098 = vsub.s32 %v1049, %v1097
        %v1099 = vrot.slane %v1005, %v1098
        %v1100 = vlaneseq
        %v1101 = vshrl.u32 %v1100, 7
        %v1102 = vsub.s32 %v1054, %v1101
        %v1103 = vrot.slane %v1008, %v1102
        %v1104 = vsel %vm1059, %v1103, %v1099
        %v1105 = vlaneseq
        %v1106 = vshrl.u32 %v1105, 7
        %v1107 = vsub.s32 %v1061, %v1106
        %v1108 = vrot.slane %v1011, %v1107
        %v1109 = vsel %vm1066, %v1108, %v1104
        %v1110 = vlaneseq
        %v1111 = vshrl.u32 %v1110, 7
        %v1112 = vsub.s32 %v1049, %v1111
        %v1113 = vrot.slane %v1014, %v1112
        %v1114 = vlaneseq
        %v1115 = vshrl.u32 %v1114, 7
        %v1116 = vsub.s32 %v1054, %v1115
        %v1117 = vrot.slane %v1017, %v1116
        %v1118 = vsel %vm1059, %v1117, %v1113
        %v1119 = vlaneseq
        %v1120 = vshrl.u32 %v1119, 7
        %v1121 = vsub.s32 %v1061, %v1120
        %v1122 = vrot.slane %v1020, %v1121
        %v1123 = vsel %vm1066, %v1122, %v1118
        %v1124 = vlaneseq
        %v1125 = vshrl.u32 %v1124, 7
        %v1126 = vsub.s32 %v1049, %v1125
        %v1127 = vrot.slane %v1023, %v1126
        %v1128 = vlaneseq
        %v1129 = vshrl.u32 %v1128, 7
        %v1130 = vsub.s32 %v1054, %v1129
        %v1131 = vrot.slane %v1026, %v1130
        %v1132 = vsel %vm1059, %v1131, %v1127
        %v1133 = vlaneseq
        %v1134 = vshrl.u32 %v1133, 7
        %v1135 = vsub.s32 %v1061, %v1134
        %v1136 = vrot.slane %v1029, %v1135
        %v1137 = vsel %vm1066, %v1136, %v1132
        %v1138 = vlaneseq
        %v1139 = vshrl.u32 %v1138, 7
        %v1140 = vsub.s32 %v1049, %v1139
        %v1141 = vrot.slane %v1032, %v1140
        %v1142 = vlaneseq
        %v1143 = vshrl.u32 %v1142, 7
        %v1144 = vsub.s32 %v1054, %v1143
        %v1145 = vrot.slane %v1035, %v1144
        %v1146 = vsel %vm1059, %v1145, %v1141
        %v1147 = vlaneseq
        %v1148 = vshrl.u32 %v1147, 7
        %v1149 = vsub.s32 %v1061, %v1148
        %v1150 = vrot.slane %v1038, %v1149
        %v1151 = vsel %vm1066, %v1150, %v1146
        %v1152 = vlaneseq
        %v1153 = vshrl.u32 %v1152, 7
        %v1154 = vsub.s32 %v1049, %v1153
        %v1155 = vrot.slane %v1041, %v1154
        %v1156 = vlaneseq
        %v1157 = vshrl.u32 %v1156, 7
        %v1158 = vsub.s32 %v1054, %v1157
        %v1159 = vrot.slane %v1044, %v1158
        %v1160 = vsel %vm1059, %v1159, %v1155
        %v1161 = vlaneseq
        %v1162 = vshrl.u32 %v1161, 7
        %v1163 = vsub.s32 %v1061, %v1162
        %v1164 = vrot.slane %v1047, %v1163
        %v1165 = vsel %vm1066, %v1164, %v1160
        %vm1166 = vcmask 1041409
        %v1167 = vsel %vm1166, %v1081, %v1067
        %vm1168 = vcmask 1042434
        %v1169 = vsel %vm1168, %v1095, %v1167
        %vm1170 = vcmask 1043459
        %v1171 = vsel %vm1170, %v1109, %v1169
        %vm1172 = vcmask 1044484
        %v1173 = vsel %vm1172, %v1123, %v1171
        %vm1174 = vcmask 1045509
        %v1175 = vsel %vm1174, %v1137, %v1173
        %vm1176 = vcmask 1046534
        %v1177 = vsel %vm1176, %v1151, %v1175
        %vm1178 = vcmask 1047559
        %v1179 = vsel %vm1178, %v1165, %v1177
        %vm1181 = vcmask 195584
        %v1182 = vsel %vm1181, %v1179, 0.0
        %1183 = vadd.xlane.f32.xlu0 %v1182
        %v1184 = vpop.xlane.xlu0 %1183
        %v1185 = vlog2.pop %v358
        %v1186 = vmul.f32 %v1185, 0.6931472
        %v1187 = vsub.f32 %v353, %v1186
        %v1188 = vsel %vm349, %v1187, 0.0
        %1189 = vadd.xlane.f32.xlu0 %v1188
        %v1190 = vpop.xlane.xlu0 %1189
        %v1191 = vld [vmem:[#allocation5] sm:$0x1]
        %v1192 = vmul.f32 %v348, %v1184
        %vm1193 = vcmask 7168
        %v1194 = vsel %vm1193, %v1192, 0.0
        %v1195 = vrot.slane %v1194, 4
        %v1196 = vadd.f32 %v1194, %v1195
        %v1197 = vrot.slane %v1196, 2
        %v1198 = vadd.f32 %v1196, %v1197
        %v1199 = vrot.slane %v1198, 1
        %v1200 = vadd.f32 %v1198, %v1199
        %v1201 = vsub.f32 0.0, %v1200
        %v1202 = vadd.f32 %v1191, %v1201
        %vm1203 = vcmask 0
        %1204 = vst.msk [vmem:[#allocation5] sm:$0x1] %vm1203, %v1202
        %v1205 = vld [vmem:[#allocation6] sm:$0x1]
        %v1206 = vmul.f32 %v348, %v1190
        %v1207 = vsel %vm1193, %v1206, 0.0
        %v1208 = vrot.slane %v1207, 4
        %v1209 = vadd.f32 %v1207, %v1208
        %v1210 = vrot.slane %v1209, 2
        %v1211 = vadd.f32 %v1209, %v1210
        %v1212 = vrot.slane %v1211, 1
        %v1213 = vadd.f32 %v1211, %v1212
        %v1214 = vmul.f32 %v1213, 87.5
        %v1215 = vadd.f32 %v1205, %v1214
        %1216 = vst.msk [vmem:[#allocation6] sm:$0x1] %vm1203, %v1215
        // Predicated region
        $region53: #{tpu_custom_call.1} parent=43 // pred_check
          %p1217 = pneg %p183
        $region54: #{tpu_custom_call.1} parent=43 // pred_check_branch
          %1219 = sbr.rel (%p1217) target = $region56
        $region55: #{tpu_custom_call.1} parent=43 // pred_region
          %s1221 = ssub.s32 16, 16
          %1222 = vsyncadd [#allocation4], %s1221
          %s1224 = sshll.u32 [#allocation5], 4
          %s1225 = int_to_ptr.vmem [resolvable:$true] %s1224
          %1227 = dma.vmem_to_hbm [thread:$0]  %s1225, 16, %s6, [#allocation4]
        $region56: #{tpu_custom_call.1} parent=43 // pred_fallthru
          _
        // Predicated region
        $region57: #{tpu_custom_call.1} parent=43 // pred_check
          %p1228 = pneg %p204
        $region58: #{tpu_custom_call.1} parent=43 // pred_check_branch
          %1230 = sbr.rel (%p1228) target = $region60
        $region59: #{tpu_custom_call.1} parent=43 // pred_region
          %s1232 = ssub.s32 16, 16
          %1233 = vsyncadd [#allocation7], %s1232
          %s1235 = sshll.u32 [#allocation6], 4
          %s1236 = int_to_ptr.vmem [resolvable:$true] %s1235
          %1238 = dma.vmem_to_hbm [thread:$0]  %s1236, 16, %s7, [#allocation7]
        $region60: #{tpu_custom_call.1} parent=43 // pred_fallthru
          _
        // Predicated region
        $region61: #{tpu_custom_call.1} parent=43 // pred_check
          %p1239 = pneg %p183
        $region62: #{tpu_custom_call.1} parent=43 // pred_check_branch
          %1241 = sbr.rel (%p1239) target = $region64
        $region63: #{tpu_custom_call.1} parent=43 // pred_region
          %1242 = dma.done [#allocation4], 16
        $region64: #{tpu_custom_call.1} parent=43 // pred_fallthru
          _
        // Predicated region
        $region65: #{tpu_custom_call.1} parent=43 // pred_check
          %p1243 = pneg %p204
        $region66: #{tpu_custom_call.1} parent=43 // pred_check_branch
          %1245 = sbr.rel (%p1243) target = $region68
        $region67: #{tpu_custom_call.1} parent=43 // pred_region
          %1246 = dma.done [#allocation7], 16
        $region68: #{tpu_custom_call.1} parent=43 // pred_fallthru
          _
      $region44: #{tpu_custom_call.1} parent=5 // pred_fallthru
        _
      %p1247 = scmp.le.s32.totalorder 2, %s19
      // Predicated region
      $region69: #{tpu_custom_call.1} parent=5 // pred_check
        %p1248 = pneg %p1247
      $region70: #{tpu_custom_call.1} parent=5 // pred_check_branch
        %1250 = sbr.rel (%p1248) target = $region72
      $region71: #{tpu_custom_call.1} parent=5 // pred_region
        %s1251 = ssub.s32 %s19, 2
      $region72: #{tpu_custom_call.1} parent=5 // pred_fallthru
        _
    $region6: #{tpu_custom_call.1} parent=1 // loop_footer
      %s23 = sadd.s32 1, %s19
    $region7: #{tpu_custom_call.1} parent=1 // loop_footer_branch
      %18 = sbr.rel target = $region3
    $region8: #{tpu_custom_call.1} parent=1 // loop_exit
      _
    %1252 = vsyncpa [#allocation3], 1
    %s1253 = scalar_lea.sflag [#allocation3], 1
    %1254 = vsyncpa %s1253, 1
    %1255 = vsyncpa [#allocation4], 1
    %s1256 = scalar_lea.sflag [#allocation4], 1
    %1257 = vsyncpa %s1256, 1
    %1258 = vsyncpa [#allocation7], 1

</llo_original>
